<compile_context>
chip_gen: v5e
topology: v5e:2x2
jax: 0.10.0
libtpu: 0.0.40
codegen_flags: <defaults>
</compile_context>

<pallas_src>
import jax
import jax.numpy as jnp
from jax.experimental import pallas as pl
from jax.experimental.pallas import tpu as pltpu


# Padded lane dims (all multiples of 128 on the lane axis).
H1 = 128          # first hidden (already 128)
H2_PAD = 128      # second hidden 64 -> 128
A_PAD = 128       # num_actions 2 -> 128


def _round_up(v, m):
    return (v + m - 1) // m * m


def _choose_bm(batch):
    """Rows of the batch processed per grid step."""
    if batch <= 256:
        # Small batch: one tile, rounded up to a sublane multiple.
        return max(8, _round_up(batch, 8))
    # Large batch: big tiles (512+ rows reaches ~85% of HBM roofline, fewer
    # per-step overheads), but guarantee >= 2 tiles so v7x's two TensorCores
    # both get work from the "parallel" batch axis.
    return min(2048, _round_up(pl.cdiv(batch, 2), 8))


def qnetwork_kernel(x_ref, w1_ref, b1_ref, w2_ref, b2_ref, w3_ref, b3_ref,
                    out_ref):
    # Layer 1: (bm, 182) @ (182, 128) + b1, ReLU.  bf16 MXU matmul, f32 accum.
    x = x_ref[...].astype(jnp.bfloat16)
    h1 = jnp.dot(x, w1_ref[...], preferred_element_type=jnp.float32)
    h1 = jnp.maximum(h1 + b1_ref[...], 0.0)

    # Layer 2: (bm, 128) @ (128, 128) + b2, ReLU (cols 64..127 are zero pad).
    h2 = jnp.dot(h1.astype(jnp.bfloat16), w2_ref[...],
                 preferred_element_type=jnp.float32)
    h2 = jnp.maximum(h2 + b2_ref[...], 0.0)

    # Layer 3: (bm, 128) @ (128, 128) + b3 -> padded Q-values (no activation).
    q = jnp.dot(h2.astype(jnp.bfloat16), w3_ref[...],
                preferred_element_type=jnp.float32)
    out_ref[...] = (q + b3_ref[...]).astype(out_ref.dtype)


def qnetwork_forward(x, packed_params, num_actions):
    """x: (batch, input_size) float32. Returns (batch, num_actions) float32."""
    w1, b1, w2, b2, w3, b3 = packed_params
    batch, in_features = x.shape
    assert w1.shape[0] == in_features, "x / w1 feature dims must match"

    bm = _choose_bm(batch)
    grid = (pl.cdiv(batch, bm),)   # ragged last block is masked by Pallas

    # Constant index_map => weights/biases stay resident in VMEM for the whole
    # grid and are never re-DMA'd.  (pipeline_mode=pl.Buffered(1) would also
    # drop their redundant second buffer, ~130 KB; left at the default since
    # that VMEM headroom is not needed at bm<=2048.)
    resident = lambda shape: pl.BlockSpec(shape, lambda i: (0, 0))

    out_padded = pl.pallas_call(
        qnetwork_kernel,
        out_shape=jax.ShapeDtypeStruct((batch, A_PAD), jnp.bfloat16),
        grid=grid,
        in_specs=[
            pl.BlockSpec((bm, in_features), lambda i: (i, 0)),  # x tile/step
            resident(w1.shape), resident(b1.shape),
            resident(w2.shape), resident(b2.shape),
            resident(w3.shape), resident(b3.shape),
        ],
        out_specs=pl.BlockSpec((bm, A_PAD), lambda i: (i, 0)),
        compiler_params=pltpu.CompilerParams(
            dimension_semantics=("parallel",)),       # 2x on v7x megacore
    )(x, w1, b1, w2, b2, w3, b3)

    return out_padded[:, :num_actions].astype(jnp.float32)


def init_params(key, input_size, num_actions):
    """nn.Linear-style init (U[-1/sqrt(fan_in), 1/sqrt(fan_in)]), (in,out) layout."""
    def linear(k, fan_in, fan_out):
        kw, kb = jax.random.split(k)
        bound = 1.0 / jnp.sqrt(fan_in)
        w = jax.random.uniform(kw, (fan_in, fan_out), jnp.float32, -bound, bound)
        b = jax.random.uniform(kb, (1, fan_out), jnp.float32, -bound, bound)
        return w, b

    k1, k2, k3 = jax.random.split(key, 3)
    w1, b1 = linear(k1, input_size, 128)
    w2, b2 = linear(k2, 128, 64)
    w3, b3 = linear(k3, 64, num_actions)
    return (w1, b1, w2, b2, w3, b3)


def pack_params(params):
    """Zero-pad hidden/output lane dims and cast weights to bf16 for the kernel.

    w1 is left unpadded on its K axis (182) -- the kernel consumes x unpadded.
    """
    w1, b1, w2, b2, w3, b3 = params
    num_actions = w3.shape[1]

    def pad_to(a, shape):
        out = jnp.zeros(shape, jnp.float32)
        return out.at[:a.shape[0], :a.shape[1]].set(a)

    w1p = w1.astype(jnp.bfloat16)                          # (in_features, 128)
    b1p = b1                                               # bias stays f32
    w2p = pad_to(w2, (H1, H2_PAD)).astype(jnp.bfloat16)
    b2p = pad_to(b2, (1, H2_PAD))
    w3p = pad_to(w3, (H2_PAD, A_PAD)).astype(jnp.bfloat16)
    b3p = pad_to(b3, (1, A_PAD))
    return (w1p, b1p, w2p, b2p, w3p, b3p), num_actions


def reference_forward_bf16(x, packed_params, num_actions):
    """Plain-JAX reference mimicking the kernel's bf16-matmul / f32-accum math."""
    w1, b1, w2, b2, w3, b3 = packed_params
    h = jnp.dot(x.astype(jnp.bfloat16), w1, preferred_element_type=jnp.float32)
    h = jnp.maximum(h + b1, 0.0)
    h = jnp.dot(h.astype(jnp.bfloat16), w2, preferred_element_type=jnp.float32)
    h = jnp.maximum(h + b2, 0.0)
    q = jnp.dot(h.astype(jnp.bfloat16), w3, preferred_element_type=jnp.float32)
    q = (q + b3).astype(jnp.bfloat16).astype(jnp.float32)
    return q[:, :num_actions]


def reference_forward_f32(x, params):
    """True f32 reference matching the PyTorch QNetwork forward."""
    w1, b1, w2, b2, w3, b3 = params
    h = jnp.maximum(x @ w1 + b1, 0.0)
    h = jnp.maximum(h @ w2 + b2, 0.0)
    return h @ w3 + b3


if __name__ == "__main__":
    # FlappyBird-v0 lidar observation has 180 entries; module adds +2 -> 182.
    # num_actions = 2 (flap / no-op). Small batch of 8.
    input_size = 180 + 2
    num_actions = 2
    batch = 8

    key = jax.random.PRNGKey(0)
    kp, kx = jax.random.split(key)
    params = init_params(kp, input_size, num_actions)
    packed, n_act = pack_params(params)
    x = jax.random.normal(kx, (batch, input_size), jnp.float32)

    q = qnetwork_forward(x, packed, n_act)
    q = jax.block_until_ready(q)
    assert q.shape == (batch, num_actions)

    # 1) Exact-path check vs. a plain-JAX reference using identical bf16 math.
    q_bf16_ref = reference_forward_bf16(x, packed, n_act)
    assert jnp.allclose(q, q_bf16_ref, atol=1e-2, rtol=1e-2), \
        "mismatch vs bf16-math reference"

    # 2) Fidelity check vs. the true f32 (PyTorch-equivalent) forward: the
    #    bf16 MXU path deviates only by bf16 rounding noise.
    q_f32_ref = reference_forward_f32(x, params)
    assert jnp.allclose(q, q_f32_ref, atol=1e-1, rtol=1e-1), \
        "mismatch vs f32 reference"

    print("KERNEL_OK")
</pallas_src>

<mosaic_0001>
module attributes {stable_mosaic.version = 11 : i64} {
  func.func @qnetwork_kernel(%arg0: i32, %arg1: memref<8x182xf32, #tpu.memory_space<vmem>>, %arg2: memref<182x128xbf16, #tpu.memory_space<vmem>>, %arg3: memref<1x128xf32, #tpu.memory_space<vmem>>, %arg4: memref<128x128xbf16, #tpu.memory_space<vmem>>, %arg5: memref<1x128xf32, #tpu.memory_space<vmem>>, %arg6: memref<128x128xbf16, #tpu.memory_space<vmem>>, %arg7: memref<1x128xf32, #tpu.memory_space<vmem>>, %arg8: memref<8x128xbf16, #tpu.memory_space<vmem>>) attributes {dimension_semantics = [#tpu.dimension_semantics<parallel>], iteration_bounds = array<i64: 1>, scalar_prefetch = 0 : i64, scratch_operands = 0 : i64, tpu.core_type = #tpu.core_type<tc>, window_params = [{transform_indices = @transform_0, window_bounds = array<i64: 8, 182>}, {pipeline_mode = #tpu.pipeline_mode<synchronous>, transform_indices = @transform_1, window_bounds = array<i64: 182, 128>}, {pipeline_mode = #tpu.pipeline_mode<synchronous>, transform_indices = @transform_2, window_bounds = array<i64: 1, 128>}, {pipeline_mode = #tpu.pipeline_mode<synchronous>, transform_indices = @transform_3, window_bounds = array<i64: 128, 128>}, {pipeline_mode = #tpu.pipeline_mode<synchronous>, transform_indices = @transform_4, window_bounds = array<i64: 1, 128>}, {pipeline_mode = #tpu.pipeline_mode<synchronous>, transform_indices = @transform_5, window_bounds = array<i64: 128, 128>}, {pipeline_mode = #tpu.pipeline_mode<synchronous>, transform_indices = @transform_6, window_bounds = array<i64: 1, 128>}, {transform_indices = @transform_7, window_bounds = array<i64: 8, 128>}]} {
    %c0 = arith.constant 0 : index
    %c0_0 = arith.constant 0 : index
    %0 = vector.load %arg1[%c0, %c0_0] : memref<8x182xf32, #tpu.memory_space<vmem>>, vector<8x182xf32>
    %1 = arith.truncf %0 : vector<8x182xf32> to vector<8x182xbf16>
    %c0_1 = arith.constant 0 : index
    %c0_2 = arith.constant 0 : index
    %2 = vector.load %arg2[%c0_1, %c0_2] : memref<182x128xbf16, #tpu.memory_space<vmem>>, vector<182x128xbf16>
    %cst = arith.constant dense<0.000000e+00> : vector<8x128xf32>
    %3 = tpu.matmul %1, %2, %cst {dimension_numbers = #tpu.dot_dimension_numbers<[1], [0], [0], [1], [0, 0, 1, 1], [], []>} : vector<8x182xbf16>, vector<182x128xbf16>, vector<8x128xf32> -> vector<8x128xf32>
    %c0_3 = arith.constant 0 : index
    %c0_4 = arith.constant 0 : index
    %4 = vector.load %arg3[%c0_3, %c0_4] : memref<1x128xf32, #tpu.memory_space<vmem>>, vector<1x128xf32>
    %5 = vector.broadcast %4 : vector<1x128xf32> to vector<8x128xf32>
    %6 = arith.addf %3, %5 : vector<8x128xf32>
    %cst_5 = arith.constant 0.000000e+00 : f32
    %7 = vector.broadcast %cst_5 : f32 to vector<8x128xf32>
    %8 = arith.maximumf %6, %7 : vector<8x128xf32>
    %9 = arith.truncf %8 : vector<8x128xf32> to vector<8x128xbf16>
    %c0_6 = arith.constant 0 : index
    %c0_7 = arith.constant 0 : index
    %10 = vector.load %arg4[%c0_6, %c0_7] : memref<128x128xbf16, #tpu.memory_space<vmem>>, vector<128x128xbf16>
    %cst_8 = arith.constant dense<0.000000e+00> : vector<8x128xf32>
    %11 = tpu.matmul %9, %10, %cst_8 {dimension_numbers = #tpu.dot_dimension_numbers<[1], [0], [0], [1], [0, 0, 1, 1], [], []>} : vector<8x128xbf16>, vector<128x128xbf16>, vector<8x128xf32> -> vector<8x128xf32>
    %c0_9 = arith.constant 0 : index
    %c0_10 = arith.constant 0 : index
    %12 = vector.load %arg5[%c0_9, %c0_10] : memref<1x128xf32, #tpu.memory_space<vmem>>, vector<1x128xf32>
    %13 = vector.broadcast %12 : vector<1x128xf32> to vector<8x128xf32>
    %14 = arith.addf %11, %13 : vector<8x128xf32>
    %cst_11 = arith.constant 0.000000e+00 : f32
    %15 = vector.broadcast %cst_11 : f32 to vector<8x128xf32>
    %16 = arith.maximumf %14, %15 : vector<8x128xf32>
    %17 = arith.truncf %16 : vector<8x128xf32> to vector<8x128xbf16>
    %c0_12 = arith.constant 0 : index
    %c0_13 = arith.constant 0 : index
    %18 = vector.load %arg6[%c0_12, %c0_13] : memref<128x128xbf16, #tpu.memory_space<vmem>>, vector<128x128xbf16>
    %cst_14 = arith.constant dense<0.000000e+00> : vector<8x128xf32>
    %19 = tpu.matmul %17, %18, %cst_14 {dimension_numbers = #tpu.dot_dimension_numbers<[1], [0], [0], [1], [0, 0, 1, 1], [], []>} : vector<8x128xbf16>, vector<128x128xbf16>, vector<8x128xf32> -> vector<8x128xf32>
    %c0_15 = arith.constant 0 : index
    %c0_16 = arith.constant 0 : index
    %20 = vector.load %arg7[%c0_15, %c0_16] : memref<1x128xf32, #tpu.memory_space<vmem>>, vector<1x128xf32>
    %21 = vector.broadcast %20 : vector<1x128xf32> to vector<8x128xf32>
    %22 = arith.addf %19, %21 : vector<8x128xf32>
    %23 = arith.truncf %22 : vector<8x128xf32> to vector<8x128xbf16>
    %c0_17 = arith.constant 0 : index
    %c0_18 = arith.constant 0 : index
    %24 = vector.load %arg8[%c0_17, %c0_18] : memref<8x128xbf16, #tpu.memory_space<vmem>>, vector<8x128xbf16>
    tpu.vector_store %arg8[%c0_17, %c0_18], %23 {strides = array<i32>} : memref<8x128xbf16, #tpu.memory_space<vmem>>, vector<8x128xbf16>,
    return
  }
  func.func @transform_0(%arg0: i32) -> (i32, i32) {
    %c0_i32 = arith.constant 0 : i32
    %c0_i32_0 = arith.constant 0 : i32
    return %arg0, %c0_i32 : i32, i32
  }
  func.func @transform_1(%arg0: i32) -> (i32, i32) {
    %c0_i32 = arith.constant 0 : i32
    %c0_i32_0 = arith.constant 0 : i32
    %c0_i32_1 = arith.constant 0 : i32
    return %c0_i32, %c0_i32_0 : i32, i32
  }
  func.func @transform_2(%arg0: i32) -> (i32, i32) {
    %c0_i32 = arith.constant 0 : i32
    %c0_i32_0 = arith.constant 0 : i32
    %c0_i32_1 = arith.constant 0 : i32
    return %c0_i32, %c0_i32_0 : i32, i32
  }
  func.func @transform_3(%arg0: i32) -> (i32, i32) {
    %c0_i32 = arith.constant 0 : i32
    %c0_i32_0 = arith.constant 0 : i32
    %c0_i32_1 = arith.constant 0 : i32
    return %c0_i32, %c0_i32_0 : i32, i32
  }
  func.func @transform_4(%arg0: i32) -> (i32, i32) {
    %c0_i32 = arith.constant 0 : i32
    %c0_i32_0 = arith.constant 0 : i32
    %c0_i32_1 = arith.constant 0 : i32
    return %c0_i32, %c0_i32_0 : i32, i32
  }
  func.func @transform_5(%arg0: i32) -> (i32, i32) {
    %c0_i32 = arith.constant 0 : i32
    %c0_i32_0 = arith.constant 0 : i32
    %c0_i32_1 = arith.constant 0 : i32
    return %c0_i32, %c0_i32_0 : i32, i32
  }
  func.func @transform_6(%arg0: i32) -> (i32, i32) {
    %c0_i32 = arith.constant 0 : i32
    %c0_i32_0 = arith.constant 0 : i32
    %c0_i32_1 = arith.constant 0 : i32
    return %c0_i32, %c0_i32_0 : i32, i32
  }
  func.func @transform_7(%arg0: i32) -> (i32, i32) {
    %c0_i32 = arith.constant 0 : i32
    %c0_i32_0 = arith.constant 0 : i32
    return %arg0, %c0_i32 : i32, i32
  }
}

</mosaic_0001>

<llo_original>
// kernel: tpu_custom_call.1
$region0: #{tpu_custom_call.1}
  #allocation0 [shape = 'u32[]', space=smem, size = 0x4, offset = 0x4, fixed_abs, tag = 'smem constant byte address 0x4 - core index']
  #allocation1 [shape = 'u32[72,128]{1,0:T(1,128)}', space=vmem, size = 0x9000, scoped, tag = 'internal scratch']
  %s0 = inlined_call_operand.hbm [shape: f32[8,182], index: 0, kind: input, shape index: {}]
  %s1 = inlined_call_operand.hbm [shape: bf16[182,128], index: 1, kind: input, shape index: {}]
  %s2 = inlined_call_operand.vmem [shape: f32[1,128], index: 2, kind: input, shape index: {}]
  %s3 = inlined_call_operand.hbm [shape: bf16[128,128], index: 3, kind: input, shape index: {}]
  %s4 = inlined_call_operand.vmem [shape: f32[1,128], index: 4, kind: input, shape index: {}]
  %s5 = inlined_call_operand.hbm [shape: bf16[128,128], index: 5, kind: input, shape index: {}]
  %s6 = inlined_call_operand.vmem [shape: f32[1,128], index: 6, kind: input, shape index: {}]
  %s7 = inlined_call_operand.hbm [shape: bf16[8,128], index: 7, kind: output, shape index: {}]
  %s8 = sld [smem:[#allocation0]]
  $region54: #{tpu_custom_call.1} parent=0
    _
  %s10 = ssub.s32 1, %s8
  %s11 = scalar_select 0, %s10, %s8
  $region1: #{tpu_custom_call.1} parent=0
    #allocation2 [shape = 'u8[8192]{0}', space=vmem, size = 0x2000, scoped, tag = 'input window, operand 0, single buffered']
    #allocation3 [shape = 's32[1]{0}', space=sflag, size = 0x4, scoped, tag = 'scoped memory for tpu_custom_call.1']
    #allocation4 [shape = 's32[1]{0}', space=sflag, size = 0x4, scoped, tag = 'scoped memory for tpu_custom_call.1']
    #allocation5 [shape = 'u8[47104]{0}', space=vmem, size = 0xb800, scoped, tag = 'input window, operand 1, single buffered']
    #allocation6 [shape = 's32[1]{0}', space=sflag, size = 0x4, scoped, tag = 'scoped memory for tpu_custom_call.1']
    #allocation7 [shape = 'u8[32768]{0}', space=vmem, size = 0x8000, scoped, tag = 'input window, operand 3, single buffered']
    #allocation8 [shape = 'u8[32768]{0}', space=vmem, size = 0x8000, scoped, tag = 'input window, operand 5, single buffered']
    #allocation9 [shape = 's32[1]{0}', space=sflag, size = 0x4, scoped, tag = 'scoped memory for tpu_custom_call.1']
    #allocation10 [shape = 'u8[2048]{0}', space=vmem, size = 0x800, scoped, tag = 'output window, operand 0, single buffered']
    %12 = vsyncpa [#allocation3], 0
    %13 = vsyncpa [#allocation6], 0
    %14 = vsyncpa [#allocation9], 0
    %15 = vsyncpa [#allocation4], 0
    // Predicated region
    $region2: #{tpu_custom_call.1} parent=1 // pred_check
      _
    $region3: #{tpu_custom_call.1} parent=1 // pred_check_branch
      %17 = sbr.rel (0) target = $region5
    $region4: #{tpu_custom_call.1} parent=1 // pred_region
      %19 = vsyncadd [#allocation3], 0
      %s21 = sshll.u32 %s0, 4
      %s22 = int_to_ptr.hbm [resolvable:$true] %s21
      %s23 = sshll.u32 [#allocation2], 4
      %s24 = int_to_ptr.vmem [resolvable:$true] %s23
      %26 = dma.hbm_to_vmem [thread:$0]  %s22, 256, %s24, [#allocation3]
    $region5: #{tpu_custom_call.1} parent=1 // pred_fallthru
      _
    // Predicated region
    $region6: #{tpu_custom_call.1} parent=1 // pred_check
      _
    $region7: #{tpu_custom_call.1} parent=1 // pred_check_branch
      %28 = sbr.rel (0) target = $region9
    $region8: #{tpu_custom_call.1} parent=1 // pred_region
      %30 = vsyncadd [#allocation6], 0
      %s31 = sshll.u32 %s1, 4
      %s32 = int_to_ptr.hbm [resolvable:$true] %s31
      %s33 = sshll.u32 [#allocation5], 4
      %s34 = int_to_ptr.vmem [resolvable:$true] %s33
      %39 = dma.hbm_to_vmem [thread:$0]  %s32, 1472, %s34, [#allocation6], 64, 64, 4
    $region9: #{tpu_custom_call.1} parent=1 // pred_fallthru
      _
    // Predicated region
    $region10: #{tpu_custom_call.1} parent=1 // pred_check
      _
    $region11: #{tpu_custom_call.1} parent=1 // pred_check_branch
      %41 = sbr.rel (0) target = $region13
    $region12: #{tpu_custom_call.1} parent=1 // pred_region
      _
    $region13: #{tpu_custom_call.1} parent=1 // pred_fallthru
      _
    // Predicated region
    $region14: #{tpu_custom_call.1} parent=1 // pred_check
      _
    $region15: #{tpu_custom_call.1} parent=1 // pred_check_branch
      %43 = sbr.rel (0) target = $region17
    $region16: #{tpu_custom_call.1} parent=1 // pred_region
      %45 = vsyncadd [#allocation6], 0
      %s46 = sshll.u32 %s3, 4
      %s47 = int_to_ptr.hbm [resolvable:$true] %s46
      %s48 = sshll.u32 [#allocation7], 4
      %s49 = int_to_ptr.vmem [resolvable:$true] %s48
      %54 = dma.hbm_to_vmem [thread:$0]  %s47, 1024, %s49, [#allocation6], 64, 64, 4
    $region17: #{tpu_custom_call.1} parent=1 // pred_fallthru
      _
    // Predicated region
    $region18: #{tpu_custom_call.1} parent=1 // pred_check
      _
    $region19: #{tpu_custom_call.1} parent=1 // pred_check_branch
      %56 = sbr.rel (0) target = $region21
    $region20: #{tpu_custom_call.1} parent=1 // pred_region
      _
    $region21: #{tpu_custom_call.1} parent=1 // pred_fallthru
      _
    // Predicated region
    $region22: #{tpu_custom_call.1} parent=1 // pred_check
      _
    $region23: #{tpu_custom_call.1} parent=1 // pred_check_branch
      %58 = sbr.rel (0) target = $region25
    $region24: #{tpu_custom_call.1} parent=1 // pred_region
      %60 = vsyncadd [#allocation9], 0
      %s61 = sshll.u32 %s5, 4
      %s62 = int_to_ptr.hbm [resolvable:$true] %s61
      %s63 = sshll.u32 [#allocation8], 4
      %s64 = int_to_ptr.vmem [resolvable:$true] %s63
      %69 = dma.hbm_to_vmem [thread:$0]  %s62, 1024, %s64, [#allocation9], 64, 64, 4
    $region25: #{tpu_custom_call.1} parent=1 // pred_fallthru
      _
    // Predicated region
    $region26: #{tpu_custom_call.1} parent=1 // pred_check
      _
    $region27: #{tpu_custom_call.1} parent=1 // pred_check_branch
      %71 = sbr.rel (0) target = $region29
    $region28: #{tpu_custom_call.1} parent=1 // pred_region
      _
    $region29: #{tpu_custom_call.1} parent=1 // pred_fallthru
      _
    // Predicated region
    $region30: #{tpu_custom_call.1} parent=1 // pred_check
      _
    $region31: #{tpu_custom_call.1} parent=1 // pred_check_branch
      %73 = sbr.rel (0) target = $region33
    $region32: #{tpu_custom_call.1} parent=1 // pred_region
      %75 = dma.done [#allocation3], 256
    $region33: #{tpu_custom_call.1} parent=1 // pred_fallthru
      _
    // Predicated region
    $region34: #{tpu_custom_call.1} parent=1 // pred_check
      _
    $region35: #{tpu_custom_call.1} parent=1 // pred_check_branch
      %77 = sbr.rel (0) target = $region37
    $region36: #{tpu_custom_call.1} parent=1 // pred_region
      %79 = dma.done [#allocation6], 1472
    $region37: #{tpu_custom_call.1} parent=1 // pred_fallthru
      _
    // Predicated region
    $region38: #{tpu_custom_call.1} parent=1 // pred_check
      _
    $region39: #{tpu_custom_call.1} parent=1 // pred_check_branch
      %81 = sbr.rel (0) target = $region41
    $region40: #{tpu_custom_call.1} parent=1 // pred_region
      %83 = dma.done [#allocation6], 1024
    $region41: #{tpu_custom_call.1} parent=1 // pred_fallthru
      _
    // Predicated region
    $region42: #{tpu_custom_call.1} parent=1 // pred_check
      _
    $region43: #{tpu_custom_call.1} parent=1 // pred_check_branch
      %85 = sbr.rel (0) target = $region45
    $region44: #{tpu_custom_call.1} parent=1 // pred_region
      %87 = dma.done [#allocation9], 1024
    $region45: #{tpu_custom_call.1} parent=1 // pred_fallthru
      _
    %v89 = vld [vmem:[#allocation2] sm:$0xff]
    %v90 = vld [vmem:[#allocation2 + $0x8] sm:$0xff]
    %v91 = vpack.c.bf16 %v89, %v89
    %v92 = vpack.c.bf16 %v90, %v90
    %v93 = vld [vmem:[#allocation5] sm:$0xf]
    %v94 = vld [vmem:[#allocation5 + $0x4] sm:$0xf]
    %v95 = vld [vmem:[#allocation5 + $0x8] sm:$0xf]
    %v96 = vld [vmem:[#allocation5 + $0xc] sm:$0xf]
    %v97 = vld [vmem:[#allocation5 + $0x10] sm:$0xf]
    %v98 = vld [vmem:[#allocation5 + $0x14] sm:$0xf]
    %v99 = vld [vmem:[#allocation5 + $0x18] sm:$0xf]
    %v100 = vld [vmem:[#allocation5 + $0x1c] sm:$0xf]
    %v101 = vld [vmem:[#allocation5 + $0x20] sm:$0xf]
    %v102 = vld [vmem:[#allocation5 + $0x24] sm:$0xf]
    %v103 = vld [vmem:[#allocation5 + $0x28] sm:$0xf]
    %v104 = vld [vmem:[#allocation5 + $0x2c] sm:$0xf]
    %v105 = vld [vmem:[#allocation5 + $0x30] sm:$0xf]
    %v106 = vld [vmem:[#allocation5 + $0x34] sm:$0xf]
    %v107 = vld [vmem:[#allocation5 + $0x38] sm:$0xf]
    %v108 = vld [vmem:[#allocation5 + $0x3c] sm:$0xf]
    %v109 = vld [vmem:[#allocation5 + $0x40] sm:$0xf]
    %v110 = vld [vmem:[#allocation5 + $0x44] sm:$0xf]
    %v111 = vld [vmem:[#allocation5 + $0x48] sm:$0xf]
    %v112 = vld [vmem:[#allocation5 + $0x4c] sm:$0xf]
    %v113 = vld [vmem:[#allocation5 + $0x50] sm:$0xf]
    %v114 = vld [vmem:[#allocation5 + $0x54] sm:$0xf]
    %v115 = vld [vmem:[#allocation5 + $0x58] sm:$0x7]
    %v116 = vld [vmem:[%s2] sm:$0x1]
    %v118 = vperm.slane %v116, 0
    %v143 = vunpack.c.l.b16 %v93
    %v144 = vunpack.c.l.b16 %v94
    %v145 = vunpack.c.l.b16 %v95
    %v146 = vunpack.c.l.b16 %v96
    %v147 = vunpack.c.l.b16 %v97
    %v148 = vunpack.c.l.b16 %v98
    %v149 = vunpack.c.l.b16 %v99
    %v150 = vunpack.c.l.b16 %v100
    %v151 = vunpack.c.l.b16 %v101
    %v152 = vunpack.c.l.b16 %v102
    %v153 = vunpack.c.l.b16 %v103
    %v154 = vunpack.c.l.b16 %v104
    %v155 = vunpack.c.l.b16 %v105
    %v156 = vunpack.c.l.b16 %v106
    %v157 = vunpack.c.l.b16 %v107
    %v158 = vunpack.c.l.b16 %v108
    %v159 = vunpack.c.l.b16 %v109
    %v160 = vunpack.c.l.b16 %v110
    %v161 = vunpack.c.l.b16 %v111
    %v162 = vunpack.c.l.b16 %v112
    %v163 = vunpack.c.l.b16 %v113
    %v164 = vunpack.c.l.b16 %v114
    %v165 = vunpack.c.l.b16 %v115
    %v166 = vpack.c.b16 %v144, %v143
    %v167 = vpack.c.b16 %v146, %v145
    %v168 = vpack.c.b16 %v148, %v147
    %v169 = vpack.c.b16 %v150, %v149
    %v170 = vpack.c.b16 %v152, %v151
    %v171 = vpack.c.b16 %v154, %v153
    %v172 = vpack.c.b16 %v156, %v155
    %v173 = vpack.c.b16 %v158, %v157
    %v174 = vpack.c.b16 %v160, %v159
    %v175 = vpack.c.b16 %v162, %v161
    %v176 = vpack.c.b16 %v164, %v163
    %v177 = vpack.c.b16 %v165, %v165
    %vm189 = vcmask 441344
    %v191 = vsel %vm189, %v92, 0
    %vm193 = vcmask 1042432
    %v195 = vsel %vm193, %v177, 0
    %197 = vmatpush.bf16.msra.mxu0 %v173
    %198 = vmatpush.bf16.msra.mxu0 %v172
    %199 = vmatpush.bf16.msra.mxu0 %v171
    %200 = vmatpush.bf16.msra.mxu0 %v170
    %201 = vmatpush.bf16.msra.mxu0 %v169
    %202 = vmatpush.bf16.msra.mxu0 %v168
    %203 = vmatpush.bf16.msra.mxu0 %v167
    %204 = vmatpush.bf16.msra.mxu0 %v166
    %205 = vmatmul.bf16.gmra.mxu0 %v91
    %v206 = vpop.f32.mrf.mxu0
    %v207 = vadd.f32 %v118, %v206
    %v208 = vpop.f32.mrf.mxu0
    %209 = vdwg.mxu0
    %210 = vmatpush.bf16.msra.mxu0 0
    %211 = vmatpush.bf16.msra.mxu0 0
    %212 = vmatpush.bf16.msra.mxu0 0
    %213 = vmatpush.bf16.msra.mxu0 0
    %214 = vmatpush.bf16.msra.mxu0 %v195
    %215 = vmatpush.bf16.msra.mxu0 %v176
    %216 = vmatpush.bf16.msra.mxu0 %v175
    %217 = vmatpush.bf16.msra.mxu0 %v174
    %218 = vmatmul.bf16.gmra.mxu0 %v191
    %v219 = vpop.f32.mrf.mxu0
    %v220 = vadd.f32 %v207, %v219
    %v221 = vpop.f32.mrf.mxu0
    %222 = vdwg.mxu0
    %v223 = vmax.f32 %v220, 0.0
    %v224 = vpack.c.bf16 %v223, %v223
    %v225 = vld [vmem:[#allocation7] sm:$0xf]
    %v226 = vld [vmem:[#allocation7 + $0x4] sm:$0xf]
    %v227 = vld [vmem:[#allocation7 + $0x8] sm:$0xf]
    %v228 = vld [vmem:[#allocation7 + $0xc] sm:$0xf]
    %v229 = vld [vmem:[#allocation7 + $0x10] sm:$0xf]
    %v230 = vld [vmem:[#allocation7 + $0x14] sm:$0xf]
    %v231 = vld [vmem:[#allocation7 + $0x18] sm:$0xf]
    %v232 = vld [vmem:[#allocation7 + $0x1c] sm:$0xf]
    %v233 = vld [vmem:[#allocation7 + $0x20] sm:$0xf]
    %v234 = vld [vmem:[#allocation7 + $0x24] sm:$0xf]
    %v235 = vld [vmem:[#allocation7 + $0x28] sm:$0xf]
    %v236 = vld [vmem:[#allocation7 + $0x2c] sm:$0xf]
    %v237 = vld [vmem:[#allocation7 + $0x30] sm:$0xf]
    %v238 = vld [vmem:[#allocation7 + $0x34] sm:$0xf]
    %v239 = vld [vmem:[#allocation7 + $0x38] sm:$0xf]
    %v240 = vld [vmem:[#allocation7 + $0x3c] sm:$0xf]
    %v241 = vld [vmem:[%s4] sm:$0x1]
    %v243 = vperm.slane %v241, 0
    %v261 = vunpack.c.l.b16 %v225
    %v262 = vunpack.c.l.b16 %v226
    %v263 = vunpack.c.l.b16 %v227
    %v264 = vunpack.c.l.b16 %v228
    %v265 = vunpack.c.l.b16 %v229
    %v266 = vunpack.c.l.b16 %v230
    %v267 = vunpack.c.l.b16 %v231
    %v268 = vunpack.c.l.b16 %v232
    %v269 = vunpack.c.l.b16 %v233
    %v270 = vunpack.c.l.b16 %v234
    %v271 = vunpack.c.l.b16 %v235
    %v272 = vunpack.c.l.b16 %v236
    %v273 = vunpack.c.l.b16 %v237
    %v274 = vunpack.c.l.b16 %v238
    %v275 = vunpack.c.l.b16 %v239
    %v276 = vunpack.c.l.b16 %v240
    %v277 = vpack.c.b16 %v262, %v261
    %v278 = vpack.c.b16 %v264, %v263
    %v279 = vpack.c.b16 %v266, %v265
    %v280 = vpack.c.b16 %v268, %v267
    %v281 = vpack.c.b16 %v270, %v269
    %v282 = vpack.c.b16 %v272, %v271
    %v283 = vpack.c.b16 %v274, %v273
    %v284 = vpack.c.b16 %v276, %v275
    %293 = vmatpush.bf16.msra.mxu0 %v284
    %294 = vmatpush.bf16.msra.mxu0 %v283
    %295 = vmatpush.bf16.msra.mxu0 %v282
    %296 = vmatpush.bf16.msra.mxu0 %v281
    %297 = vmatpush.bf16.msra.mxu0 %v280
    %298 = vmatpush.bf16.msra.mxu0 %v279
    %299 = vmatpush.bf16.msra.mxu0 %v278
    %300 = vmatpush.bf16.msra.mxu0 %v277
    %301 = vmatmul.bf16.gmra.mxu0 %v224
    %v302 = vpop.f32.mrf.mxu0
    %v303 = vadd.f32 %v243, %v302
    %v304 = vpop.f32.mrf.mxu0
    %305 = vdwg.mxu0
    %v306 = vmax.f32 %v303, 0.0
    %v307 = vpack.c.bf16 %v306, %v306
    %v308 = vld [vmem:[#allocation8] sm:$0xf]
    %v309 = vld [vmem:[#allocation8 + $0x4] sm:$0xf]
    %v310 = vld [vmem:[#allocation8 + $0x8] sm:$0xf]
    %v311 = vld [vmem:[#allocation8 + $0xc] sm:$0xf]
    %v312 = vld [vmem:[#allocation8 + $0x10] sm:$0xf]
    %v313 = vld [vmem:[#allocation8 + $0x14] sm:$0xf]
    %v314 = vld [vmem:[#allocation8 + $0x18] sm:$0xf]
    %v315 = vld [vmem:[#allocation8 + $0x1c] sm:$0xf]
    %v316 = vld [vmem:[#allocation8 + $0x20] sm:$0xf]
    %v317 = vld [vmem:[#allocation8 + $0x24] sm:$0xf]
    %v318 = vld [vmem:[#allocation8 + $0x28] sm:$0xf]
    %v319 = vld [vmem:[#allocation8 + $0x2c] sm:$0xf]
    %v320 = vld [vmem:[#allocation8 + $0x30] sm:$0xf]
    %v321 = vld [vmem:[#allocation8 + $0x34] sm:$0xf]
    %v322 = vld [vmem:[#allocation8 + $0x38] sm:$0xf]
    %v323 = vld [vmem:[#allocation8 + $0x3c] sm:$0xf]
    %v324 = vld [vmem:[%s6] sm:$0x1]
    %v326 = vperm.slane %v324, 0
    %v344 = vunpack.c.l.b16 %v308
    %v345 = vunpack.c.l.b16 %v309
    %v346 = vunpack.c.l.b16 %v310
    %v347 = vunpack.c.l.b16 %v311
    %v348 = vunpack.c.l.b16 %v312
    %v349 = vunpack.c.l.b16 %v313
    %v350 = vunpack.c.l.b16 %v314
    %v351 = vunpack.c.l.b16 %v315
    %v352 = vunpack.c.l.b16 %v316
    %v353 = vunpack.c.l.b16 %v317
    %v354 = vunpack.c.l.b16 %v318
    %v355 = vunpack.c.l.b16 %v319
    %v356 = vunpack.c.l.b16 %v320
    %v357 = vunpack.c.l.b16 %v321
    %v358 = vunpack.c.l.b16 %v322
    %v359 = vunpack.c.l.b16 %v323
    %v360 = vpack.c.b16 %v345, %v344
    %v361 = vpack.c.b16 %v347, %v346
    %v362 = vpack.c.b16 %v349, %v348
    %v363 = vpack.c.b16 %v351, %v350
    %v364 = vpack.c.b16 %v353, %v352
    %v365 = vpack.c.b16 %v355, %v354
    %v366 = vpack.c.b16 %v357, %v356
    %v367 = vpack.c.b16 %v359, %v358
    %376 = vmatpush.bf16.msra.mxu0 %v367
    %377 = vmatpush.bf16.msra.mxu0 %v366
    %378 = vmatpush.bf16.msra.mxu0 %v365
    %379 = vmatpush.bf16.msra.mxu0 %v364
    %380 = vmatpush.bf16.msra.mxu0 %v363
    %381 = vmatpush.bf16.msra.mxu0 %v362
    %382 = vmatpush.bf16.msra.mxu0 %v361
    %383 = vmatpush.bf16.msra.mxu0 %v360
    %384 = vmatmul.bf16.gmra.mxu0 %v307
    %v385 = vpop.f32.mrf.mxu0
    %v386 = vadd.f32 %v326, %v385
    %v387 = vpop.f32.mrf.mxu0
    %388 = vdwg.mxu0
    %v389 = vpack.c.bf16 %v386, %v386
    %390 = vst [vmem:[#allocation10] sm:$0xf] %v389
    // Predicated region
    $region46: #{tpu_custom_call.1} parent=1 // pred_check
      _
    $region47: #{tpu_custom_call.1} parent=1 // pred_check_branch
      %392 = sbr.rel (0) target = $region49
    $region48: #{tpu_custom_call.1} parent=1 // pred_region
      %394 = vsyncadd [#allocation4], 0
      %s396 = sshll.u32 [#allocation10], 4
      %s397 = int_to_ptr.vmem [resolvable:$true] %s396
      %s398 = sshll.u32 %s7, 4
      %s399 = int_to_ptr.hbm [resolvable:$true] %s398
      %401 = dma.vmem_to_hbm [thread:$0]  %s397, 64, %s399, [#allocation4]
    $region49: #{tpu_custom_call.1} parent=1 // pred_fallthru
      _
    // Predicated region
    $region50: #{tpu_custom_call.1} parent=1 // pred_check
      _
    $region51: #{tpu_custom_call.1} parent=1 // pred_check_branch
      %403 = sbr.rel (0) target = $region53
    $region52: #{tpu_custom_call.1} parent=1 // pred_region
      %405 = dma.done [#allocation4], 64
    $region53: #{tpu_custom_call.1} parent=1 // pred_fallthru
      _
    %406 = vsyncpa [#allocation3], 1
    %407 = vsyncpa [#allocation6], 1
    %408 = vsyncpa [#allocation9], 1
    %409 = vsyncpa [#allocation4], 1

</llo_original>
